<compile_context>
chip_gen: v5e
topology: v5e:2x2
jax: 0.10.0
libtpu: 0.0.40
codegen_flags: <defaults>
</compile_context>

<pallas_src>
import math
import re

import jax
import jax.numpy as jnp
from jax.experimental import pallas as pl
from jax.experimental.pallas import tpu as pltpu


def binary_tanh_kernel(x_ref, o_ref):
    x = x_ref[...]
    # Constants in the output dtype: no f32 promote/downcast on 16/8-bit paths.
    one = jnp.array(1, dtype=o_ref.dtype)
    neg_one = jnp.array(-1, dtype=o_ref.dtype)
    # binarize(hardtanh(x)) == where(x >= 0, +1, -1): one cmp + one select on
    # the VPU.  x == +/-0.0 -> +1 (matches the torch `input >= 0` convention);
    # NaN -> -1 (the torch reference leaves NaN entries uninitialized, so any
    # value is acceptable there).
    o_ref[...] = jnp.where(x >= 0, one, neg_one)


# Sublane packing per element size (f32 -> 8, bf16/f16 -> 16, int8/fp8 -> 32).
_SUBLANE_PACK = {4: 8, 2: 16, 1: 32}

# Candidate lane-dense last dims (all multiples of 128 -> unmasked full-rate
# vector stores); prefer the widest one that divides the flat size.
_LANES = (1024, 512, 256, 128)


def _tpu_generation() -> int:
    """Best-effort TPU generation (e.g. 5, 6, 7); 0 if it cannot be determined."""
    try:
        kind = jax.devices()[0].device_kind
    except Exception:
        return 0
    digits = re.findall(r"\d+", kind)
    return int(digits[0]) if digits else 0


def _per_buffer_block_bytes(gen: int) -> int:
    if gen >= 7:
        return 6 * 1024 * 1024   # v7x: bigger tiles to amortize per-step overhead
    if gen == 6:
        return 4 * 1024 * 1024   # v6e: ~86% of HBM roofline at 4 MiB tiles
    return 2 * 1024 * 1024       # v5e / unknown: stays inside 16 MiB scoped VMEM


def binary_tanh(x: jax.Array, *, donate_input: bool = False) -> jax.Array:
    """Hardtanh followed by sign-binarization (+1 / -1), elementwise.

    Accepts any shape (e.g. NCHW). Output has the same shape and dtype.
    Set donate_input=True only when the input buffer is actually donated
    (jit + donate_argnums); otherwise XLA inserts a protective copy.
    """
    orig_shape = x.shape
    dtype = x.dtype
    n = math.prod(orig_shape)
    if n == 0:
        return x

    itemsize = jnp.dtype(dtype).itemsize
    pack = _SUBLANE_PACK.get(itemsize, 8)

    flat = x.reshape(-1)

    # Copy-free path: largest lane width that divides the flat size.
    lane = next((l for l in _LANES if n % l == 0), None)
    padded_n = n
    if lane is None:
        # Rare ragged fallback (n % 128 != 0): pad only the < 128-element tail
        # so the array reshapes to a lane-dense slab.  The pad / post-slice
        # each cost one extra HBM pass, but this path is essentially never hit
        # by real NN tensor shapes.
        lane = _LANES[-1]
        padded_n = pl.cdiv(n, lane) * lane
        flat = jnp.pad(flat, (0, padded_n - n))

    rows = padded_n // lane
    x2d = flat.reshape(rows, lane)  # bitcast for contiguous row-major arrays

    gen = _tpu_generation()
    block_rows_cap = max(
        pack, (_per_buffer_block_bytes(gen) // (lane * itemsize)) // pack * pack
    )

    if rows <= 2 * pack:
        # Tiny input: a single block (block shape == full array dims is always
        # legal, even when rows isn't sublane-aligned).  Not worth splitting.
        block_rows = rows
    else:
        num_blocks = pl.cdiv(rows, block_rows_cap)
        # At least two -- and an even number of -- grid steps so the "parallel"
        # grid axis shards evenly across v7x's two TensorCores.
        if num_blocks < 2:
            num_blocks = 2
        elif num_blocks % 2:
            num_blocks += 1
        # Split rows ~evenly, rounded up to the dtype's sublane packing.
        block_rows = pl.cdiv(pl.cdiv(rows, num_blocks), pack) * pack
    grid = (pl.cdiv(rows, block_rows),)  # overhanging last block is masked

    # in + out buffers, 2-deep pipelining, plus headroom for internal scratch.
    block_bytes = block_rows * lane * itemsize
    vmem_limit = min(
        48 * 1024 * 1024,
        max(32 * 1024 * 1024, 4 * block_bytes + 8 * 1024 * 1024),
    )

    out2d = pl.pallas_call(
        binary_tanh_kernel,
        out_shape=jax.ShapeDtypeStruct((rows, lane), dtype),
        grid_spec=pltpu.PrefetchScalarGridSpec(
            num_scalar_prefetch=0,
            grid=grid,
            in_specs=[pl.BlockSpec((block_rows, lane), lambda i: (i, 0))],
            out_specs=pl.BlockSpec((block_rows, lane), lambda i: (i, 0)),
        ),
        compiler_params=pltpu.CompilerParams(
            dimension_semantics=("parallel",),
            vmem_limit_bytes=vmem_limit,
        ),
        input_output_aliases=({0: 0} if donate_input else {}),
    )(x2d)

    out_flat = out2d.reshape(-1)
    if padded_n != n:
        out_flat = out_flat[:n]
    return out_flat.reshape(orig_shape)


if __name__ == "__main__":
    key = jax.random.PRNGKey(0)
    # NCHW input consistent with a conv-net BinaryTanh: batch=2, channels=4, 16x16.
    x = jax.random.normal(key, (2, 4, 16, 16), dtype=jnp.float32)

    y = jax.block_until_ready(binary_tanh(x))

    # Reference (pure JAX): binarize(hardtanh(x)) == where(x >= 0, 1, -1).
    ref = jnp.where(jnp.clip(x, -1.0, 1.0) >= 0, 1.0, -1.0).astype(x.dtype)
    assert y.shape == x.shape
    assert y.dtype == x.dtype
    assert bool(jnp.all(y == ref))

    # Exercise the rare ragged fallback (flat size not a multiple of 128).
    x_odd = jax.random.normal(jax.random.PRNGKey(1), (3, 5, 7), dtype=jnp.float32)
    y_odd = jax.block_until_ready(binary_tanh(x_odd))
    ref_odd = jnp.where(x_odd >= 0, 1.0, -1.0)
    assert y_odd.shape == x_odd.shape
    assert bool(jnp.all(y_odd == ref_odd))

    print("KERNEL_OK")
</pallas_src>

<mosaic_0001>
module attributes {stable_mosaic.version = 11 : i64} {
  func.func @binary_tanh_kernel(%arg0: i32, %arg1: memref<2x1024xf32, #tpu.memory_space<vmem>>, %arg2: memref<2x1024xf32, #tpu.memory_space<vmem>>) attributes {dimension_semantics = [#tpu.dimension_semantics<parallel>], iteration_bounds = array<i64: 1>, scalar_prefetch = 0 : i64, scratch_operands = 0 : i64, tpu.core_type = #tpu.core_type<tc>, window_params = [{transform_indices = @transform_0, window_bounds = array<i64: 2, 1024>}, {transform_indices = @transform_1, window_bounds = array<i64: 2, 1024>}]} {
    %c0 = arith.constant 0 : index
    %c0_0 = arith.constant 0 : index
    %0 = vector.load %arg1[%c0, %c0_0] : memref<2x1024xf32, #tpu.memory_space<vmem>>, vector<2x1024xf32>
    %cst = arith.constant 0.000000e+00 : f32
    %1 = vector.broadcast %cst : f32 to vector<2x1024xf32>
    %2 = arith.cmpf oge, %0, %1 : vector<2x1024xf32>
    %cst_1 = arith.constant 1.000000e+00 : f32
    %cst_2 = arith.constant -1.000000e+00 : f32
    %3 = vector.broadcast %cst_1 : f32 to vector<2x1024xf32>
    %4 = vector.broadcast %cst_2 : f32 to vector<2x1024xf32>
    %5 = arith.select %2, %3, %4 : vector<2x1024xi1>, vector<2x1024xf32>
    %c0_3 = arith.constant 0 : index
    %c0_4 = arith.constant 0 : index
    %6 = vector.load %arg2[%c0_3, %c0_4] : memref<2x1024xf32, #tpu.memory_space<vmem>>, vector<2x1024xf32>
    tpu.vector_store %arg2[%c0_3, %c0_4], %5 {strides = array<i32>} : memref<2x1024xf32, #tpu.memory_space<vmem>>, vector<2x1024xf32>,
    return
  }
  func.func @transform_0(%arg0: i32) -> (i32, i32) {
    %c0_i32 = arith.constant 0 : i32
    %c0_i32_0 = arith.constant 0 : i32
    return %arg0, %c0_i32 : i32, i32
  }
  func.func @transform_1(%arg0: i32) -> (i32, i32) {
    %c0_i32 = arith.constant 0 : i32
    %c0_i32_0 = arith.constant 0 : i32
    return %arg0, %c0_i32 : i32, i32
  }
}

</mosaic_0001>

<llo_original>
// kernel: tpu_custom_call.1
$region0: #{tpu_custom_call.1}
  #allocation0 [shape = 'u32[]', space=smem, size = 0x4, offset = 0x4, fixed_abs, tag = 'smem constant byte address 0x4 - core index']
  #allocation1 [shape = 'u32[72,128]{1,0:T(1,128)}', space=vmem, size = 0x9000, scoped, tag = 'internal scratch']
  %s0 = inlined_call_operand.hbm [shape: f32[2,1024], index: 0, kind: input, shape index: {}]
  %s1 = inlined_call_operand.hbm [shape: f32[2,1024], index: 1, kind: output, shape index: {}]
  %s2 = sld [smem:[#allocation0]]
  $region18: #{tpu_custom_call.1} parent=0
    _
  %s4 = ssub.s32 1, %s2
  %s5 = scalar_select 0, %s4, %s2
  $region1: #{tpu_custom_call.1} parent=0
    #allocation2 [shape = 'u8[8192]{0}', space=vmem, size = 0x2000, scoped, tag = 'input window, operand 0, single buffered']
    #allocation3 [shape = 's32[1]{0}', space=sflag, size = 0x4, scoped, tag = 'scoped memory for tpu_custom_call.1']
    #allocation4 [shape = 's32[1]{0}', space=sflag, size = 0x4, scoped, tag = 'scoped memory for tpu_custom_call.1']
    #allocation5 [shape = 'u8[8192]{0}', space=vmem, size = 0x2000, scoped, tag = 'output window, operand 0, single buffered']
    %6 = vsyncpa [#allocation3], 0
    %7 = vsyncpa [#allocation4], 0
    // Predicated region
    $region2: #{tpu_custom_call.1} parent=1 // pred_check
      _
    $region3: #{tpu_custom_call.1} parent=1 // pred_check_branch
      %9 = sbr.rel (0) target = $region5
    $region4: #{tpu_custom_call.1} parent=1 // pred_region
      %11 = vsyncadd [#allocation3], 0
      %s13 = sshll.u32 %s0, 4
      %s14 = int_to_ptr.hbm [resolvable:$true] %s13
      %s15 = sshll.u32 [#allocation2], 4
      %s16 = int_to_ptr.vmem [resolvable:$true] %s15
      %18 = dma.hbm_to_vmem [thread:$0]  %s14, 256, %s16, [#allocation3]
    $region5: #{tpu_custom_call.1} parent=1 // pred_fallthru
      _
    // Predicated region
    $region6: #{tpu_custom_call.1} parent=1 // pred_check
      _
    $region7: #{tpu_custom_call.1} parent=1 // pred_check_branch
      %20 = sbr.rel (0) target = $region9
    $region8: #{tpu_custom_call.1} parent=1 // pred_region
      %22 = dma.done [#allocation3], 256
    $region9: #{tpu_custom_call.1} parent=1 // pred_fallthru
      _
    %v23 = vld [vmem:[#allocation2] sm:$0xff]
    %v24 = vld [vmem:[#allocation2 + $0x8] sm:$0xff]
    %vm25 = vcmp.ge.f32.partialorder %v23, 0.0
    %vm26 = vcmp.ge.f32.partialorder %v24, 0.0
    %v27 = vsel %vm25, 1.0, -1.0
    %v28 = vsel %vm26, 1.0, -1.0
    %29 = vst [vmem:[#allocation5] sm:$0xff] %v27
    %30 = vst [vmem:[#allocation5 + $0x8] sm:$0xff] %v28
    // Predicated region
    $region10: #{tpu_custom_call.1} parent=1 // pred_check
      _
    $region11: #{tpu_custom_call.1} parent=1 // pred_check_branch
      %32 = sbr.rel (0) target = $region13
    $region12: #{tpu_custom_call.1} parent=1 // pred_region
      %34 = vsyncadd [#allocation4], 0
      %s36 = sshll.u32 [#allocation5], 4
      %s37 = int_to_ptr.vmem [resolvable:$true] %s36
      %s38 = sshll.u32 %s1, 4
      %s39 = int_to_ptr.hbm [resolvable:$true] %s38
      %41 = dma.vmem_to_hbm [thread:$0]  %s37, 256, %s39, [#allocation4]
    $region13: #{tpu_custom_call.1} parent=1 // pred_fallthru
      _
    // Predicated region
    $region14: #{tpu_custom_call.1} parent=1 // pred_check
      _
    $region15: #{tpu_custom_call.1} parent=1 // pred_check_branch
      %43 = sbr.rel (0) target = $region17
    $region16: #{tpu_custom_call.1} parent=1 // pred_region
      %45 = dma.done [#allocation4], 256
    $region17: #{tpu_custom_call.1} parent=1 // pred_fallthru
      _
    %46 = vsyncpa [#allocation3], 1
    %47 = vsyncpa [#allocation4], 1

</llo_original>
